<compile_context>
chip_gen: v7x
topology: tpu7x:2x2x1
jax: 0.10.0
libtpu: 0.0.40
codegen_flags: <defaults>
</compile_context>

<pallas_src>
import functools

import jax
import jax.numpy as jnp
from jax.experimental import pallas as pl
from jax.experimental.pallas import tpu as pltpu


def _round_up(x: int, m: int) -> int:
    return ((x + m - 1) // m) * m


def _vmem_cap_bytes() -> int:
    try:
        return int(pltpu.get_tpu_info().vmem_capacity_bytes)
    except Exception:
        return 64 << 20  # conservative fallback (v7x per-TC VMEM)


def _classifier_kernel(x_ref, w_ref, b_ref, o_ref, *,
                       apply_sigmoid: bool, v_total: int, tk: int, has_tail: bool):
    # x_ref: (TB, TK) VMEM    w_ref: (1, TK) VMEM (lane-dense)
    # b_ref: (1, 1)  SMEM     o_ref: (TB, 1) f32 VMEM (resident over k == accumulator)
    k = pl.program_id(1)
    nk = pl.num_programs(1)

    @pl.when(k == 0)
    def _init():
        o_ref[...] = jnp.zeros_like(o_ref)

    def _accumulate(mask_tail: bool):
        x_blk = x_ref[...].astype(jnp.float32)          # (TB, TK)
        w_blk = w_ref[...].astype(jnp.float32)          # (1,  TK) -> broadcast over rows
        prod = x_blk * w_blk
        if mask_tail:
            # Mask out-of-bounds vocab columns of the last (partial) K tile.
            col = jax.lax.broadcasted_iota(jnp.int32, (1, tk), 1)
            valid = (k * tk + col) < v_total            # (1, TK)
            prod = jnp.where(valid, prod, 0.0)
        o_ref[...] += jnp.sum(prod, axis=-1, keepdims=True)

    if has_tail:
        is_last = k == nk - 1

        @pl.when(is_last)
        def _tail_step():
            _accumulate(True)

        @pl.when(jnp.logical_not(is_last))
        def _body_step():
            _accumulate(False)
    else:
        _accumulate(False)

    @pl.when(k == nk - 1)
    def _finalize():
        y = o_ref[...] + b_ref[0, 0]                    # bias once, in the epilogue
        if apply_sigmoid:
            y = jax.nn.sigmoid(y)
        o_ref[...] = y


def classifier_forward(x, w, b, apply_sigmoid: bool = False, *, tb: int = 512, tk=None):
    """x: (B, V), w: (1, V) [PyTorch (out, in) layout], b: (1,) or (1,1) -> (B,) f32."""
    B, V = x.shape
    assert w.shape == (1, V), f"expected weight (1, {V}), got {w.shape}"
    b = jnp.asarray(b, jnp.float32).reshape(1, 1)

    x_itm = jnp.dtype(x.dtype).itemsize
    w_itm = jnp.dtype(w.dtype).itemsize

    # Batch tile: clamp to the problem; ensure >= 2 batch tiles when possible so
    # the "parallel" axis can shard across v7x's 2 TensorCores.
    b8 = _round_up(B, 8)
    tb_eff = min(_round_up(tb, 8), b8)
    if b8 >= 16:
        tb_eff = min(tb_eff, _round_up((b8 + 1) // 2, 8))

    # Vocab tile: target ~16 MiB of x per step (amortizes per-step overhead on
    # all generations; bf16 inputs automatically get 2x the columns).
    if tk is None:
        tk = max(512, ((16 << 20) // (tb_eff * x_itm)) // 128 * 128)
    tk_eff = min(_round_up(tk, 128), _round_up(V, 128))

    # Per-generation VMEM cap (<= 3/4 of physical: ~48 MiB v7x, ~96 MiB v5e/v6e).
    cap = min((_vmem_cap_bytes() * 3) // 4, 96 << 20)

    def _budget(tk_e):
        x_tile = tb_eff * tk_e * x_itm          # double-buffered x tile
        w_tile = 8 * tk_e * w_itm               # sublane-padded (1, TK)
        col = tb_eff * 128 * 4                  # lane-padded (TB, 1) f32 output
        return 2 * x_tile + 2 * w_tile + 2 * col + (2 << 20)

    while _budget(tk_eff) > cap and tk_eff > 512:
        tk_eff = max(512, _round_up(tk_eff // 2, 128))

    num_b = pl.cdiv(B, tb_eff)
    num_k = pl.cdiv(V, tk_eff)
    has_tail = (V % tk_eff) != 0
    Bp = num_b * tb_eff                         # output rows (padded rows sliced off)

    vmem_limit = int(min(max(_budget(tk_eff), 16 << 20), cap))

    cost = pl.CostEstimate(
        flops=2 * B * V,
        transcendentals=B if apply_sigmoid else 0,
        bytes_accessed=x.nbytes + w.nbytes + b.nbytes + B * 4,
    )

    kernel = functools.partial(
        _classifier_kernel,
        apply_sigmoid=apply_sigmoid, v_total=V, tk=tk_eff, has_tail=has_tail)

    out = pl.pallas_call(
        kernel,
        out_shape=jax.ShapeDtypeStruct((Bp, 1), jnp.float32),
        grid_spec=pltpu.PrefetchScalarGridSpec(
            num_scalar_prefetch=0,
            grid=(num_b, num_k),
            in_specs=[
                pl.BlockSpec((tb_eff, tk_eff), lambda i, k: (i, k)),   # x
                pl.BlockSpec((1, tk_eff), lambda i, k: (0, k)),        # w (lane-dense)
                pl.BlockSpec(memory_space=pltpu.MemorySpace.SMEM),     # bias scalar
            ],
            out_specs=pl.BlockSpec((tb_eff, 1), lambda i, k: (i, 0)),  # resident over k
        ),
        compiler_params=pltpu.CompilerParams(
            dimension_semantics=("parallel", "arbitrary"),
            vmem_limit_bytes=vmem_limit,
        ),
        cost_estimate=cost,
    )(x, w, b)

    # Mirror torch `.squeeze()` after dropping padded rows: (B, 1) -> (B,).
    return jnp.squeeze(out[:B, :])


def init_classifier_params(key, vocab_size):
    """nn.Linear(vocab_size, 1) init: weight (1, V) = (out, in), bias (1, 1)."""
    kw, kb = jax.random.split(key)
    bound = 1.0 / jnp.sqrt(vocab_size)
    weight = jax.random.uniform(kw, (1, vocab_size), jnp.float32, -bound, bound)
    bias = jax.random.uniform(kb, (1,), jnp.float32, -bound, bound)
    return weight, bias.reshape(1, 1)


if __name__ == "__main__":
    key = jax.random.PRNGKey(0)
    k_x, k_p, k_x2 = jax.random.split(key, 3)

    # Small shapes consistent with the module.
    batch, vocab_size = 2, 32
    x = jax.random.normal(k_x, (batch, vocab_size), jnp.float32)
    w, b = init_classifier_params(k_p, vocab_size)

    y = jax.block_until_ready(classifier_forward(x, w, b, apply_sigmoid=False))
    y_sig = jax.block_until_ready(classifier_forward(x, w, b, apply_sigmoid=True))

    ref = jnp.squeeze(x @ w.T + b.reshape(1, 1))
    assert y.shape == (batch,)
    assert jnp.allclose(y, ref, atol=1e-5, rtol=1e-5), "linear mismatch vs reference"
    assert jnp.allclose(y_sig, jax.nn.sigmoid(ref), atol=1e-5, rtol=1e-5), "sigmoid mismatch"

    # Multi-tile, tile-unaligned case: exercises the cdiv grid (no x padding),
    # in-kernel K-tail masking (1500 % 512 != 0), the >=2 batch-tile clamp, and
    # f32 accumulation in the resident output block across K tiles.
    B2, V2 = 130, 1500
    x2 = jax.random.normal(k_x2, (B2, V2), jnp.float32)
    w2, b2 = init_classifier_params(k_p, V2)
    y2 = jax.block_until_ready(
        classifier_forward(x2, w2, b2, apply_sigmoid=True, tb=64, tk=512))
    ref2 = jax.nn.sigmoid(jnp.squeeze(x2 @ w2.T + b2.reshape(1, 1)))
    assert y2.shape == (B2,)
    assert jnp.allclose(y2, ref2, atol=1e-4, rtol=1e-4), "tiled mismatch vs reference"

    # bf16 inputs (halves HBM bytes on this bandwidth-bound op); kernel upcasts
    # to f32 before accumulating, so only the input rounding differs.
    x2b = x2.astype(jnp.bfloat16)
    w2b = w2.astype(jnp.bfloat16)
    y2b = jax.block_until_ready(
        classifier_forward(x2b, w2b, b2, apply_sigmoid=True, tb=64, tk=512))
    ref2b = jax.nn.sigmoid(jnp.squeeze(
        x2b.astype(jnp.float32) @ w2b.astype(jnp.float32).T + b2.reshape(1, 1)))
    assert jnp.allclose(y2b, ref2b, atol=1e-3, rtol=1e-3), "bf16 mismatch vs reference"

    print("KERNEL_OK")
</pallas_src>

<mosaic_0001>
module attributes {stable_mosaic.version = 11 : i64} {
  func.func @_classifier_kernel(%arg0: i32, %arg1: i32, %arg2: memref<8x128xf32, #tpu.memory_space<vmem>>, %arg3: memref<1x128xf32, #tpu.memory_space<vmem>>, %arg4: memref<1x1xf32, #tpu.memory_space<smem>>, %arg5: memref<8x1xf32, #tpu.memory_space<vmem>>) attributes {dimension_semantics = [#tpu.dimension_semantics<parallel>, #tpu.dimension_semantics<arbitrary>], iteration_bounds = array<i64: 1, 1>, scalar_prefetch = 0 : i64, scratch_operands = 0 : i64, tpu.core_type = #tpu.core_type<tc>, window_params = [{transform_indices = @transform_0, window_bounds = array<i64: 8, 128>}, {transform_indices = @transform_1, window_bounds = array<i64: 1, 128>}, {transform_indices = @transform_2, window_bounds = array<i64: 1, 1>}, {transform_indices = @transform_3, window_bounds = array<i64: 8, 1>}]} {
    %c0_i32 = arith.constant 0 : i32
    %0 = arith.cmpi eq, %arg1, %c0_i32 : i32
    %1 = arith.extui %0 : i1 to i32
    %c0_i32_0 = arith.constant 0 : i32
    %2 = arith.cmpi ne, %1, %c0_i32_0 : i32
    scf.if %2 {
      %cst = arith.constant 0.000000e+00 : f32
      %12 = vector.broadcast %cst : f32 to vector<8x1xf32>
      %c0 = arith.constant 0 : index
      %c0_6 = arith.constant 0 : index
      %13 = vector.load %arg5[%c0, %c0_6] : memref<8x1xf32, #tpu.memory_space<vmem>>, vector<8x1xf32>
      tpu.vector_store %arg5[%c0, %c0_6], %12 {strides = array<i32>} : memref<8x1xf32, #tpu.memory_space<vmem>>, vector<8x1xf32>,
    } else {
    }
    %c0_i32_1 = arith.constant 0 : i32
    %3 = arith.cmpi eq, %arg1, %c0_i32_1 : i32
    %4 = arith.extui %3 : i1 to i32
    %c0_i32_2 = arith.constant 0 : i32
    %5 = arith.cmpi ne, %4, %c0_i32_2 : i32
    scf.if %5 {
      %c0 = arith.constant 0 : index
      %c0_6 = arith.constant 0 : index
      %12 = vector.load %arg2[%c0, %c0_6] : memref<8x128xf32, #tpu.memory_space<vmem>>, vector<8x128xf32>
      %c0_7 = arith.constant 0 : index
      %c0_8 = arith.constant 0 : index
      %13 = vector.load %arg3[%c0_7, %c0_8] : memref<1x128xf32, #tpu.memory_space<vmem>>, vector<1x128xf32>
      %14 = vector.broadcast %13 : vector<1x128xf32> to vector<8x128xf32>
      %15 = arith.mulf %12, %14 : vector<8x128xf32>
      %16 = tpu.iota {dimensions = array<i32: 1>} : vector<1x128xi32>
      %c128_i32 = arith.constant 128 : i32
      %17 = arith.muli %arg1, %c128_i32 : i32
      %18 = vector.broadcast %17 : i32 to vector<1x128xi32>
      %19 = arith.addi %18, %16 : vector<1x128xi32>
      %c32_i32 = arith.constant 32 : i32
      %20 = vector.broadcast %c32_i32 : i32 to vector<1x128xi32>
      %21 = arith.cmpi slt, %19, %20 : vector<1x128xi32>
      %cst = arith.constant 0.000000e+00 : f32
      %22 = vector.shape_cast %21 : vector<1x128xi1> to vector<1x128xi1>
      %23 = vector.broadcast %22 : vector<1x128xi1> to vector<8x128xi1>
      %24 = vector.broadcast %cst : f32 to vector<8x128xf32>
      %25 = arith.select %23, %15, %24 : vector<8x128xi1>, vector<8x128xf32>
      %c0_9 = arith.constant 0 : index
      %c0_10 = arith.constant 0 : index
      %26 = vector.load %arg5[%c0_9, %c0_10] : memref<8x1xf32, #tpu.memory_space<vmem>>, vector<8x1xf32>
      %cst_11 = arith.constant dense<0.000000e+00> : vector<8xf32>
      %27 = vector.multi_reduction <add>, %25, %cst_11 [1] : vector<8x128xf32> to vector<8xf32>
      %28 = vector.shape_cast %27 : vector<8xf32> to vector<8x1xf32>
      %29 = arith.addf %26, %28 : vector<8x1xf32>
      %c0_12 = arith.constant 0 : index
      %c0_13 = arith.constant 0 : index
      %30 = vector.load %arg5[%c0_12, %c0_13] : memref<8x1xf32, #tpu.memory_space<vmem>>, vector<8x1xf32>
      tpu.vector_store %arg5[%c0_12, %c0_13], %29 {strides = array<i32>} : memref<8x1xf32, #tpu.memory_space<vmem>>, vector<8x1xf32>,
    } else {
    }
    %true = arith.constant true
    %6 = arith.xori %3, %true : i1
    %7 = arith.extui %6 : i1 to i32
    %c0_i32_3 = arith.constant 0 : i32
    %8 = arith.cmpi ne, %7, %c0_i32_3 : i32
    scf.if %8 {
      %c0 = arith.constant 0 : index
      %c0_6 = arith.constant 0 : index
      %12 = vector.load %arg2[%c0, %c0_6] : memref<8x128xf32, #tpu.memory_space<vmem>>, vector<8x128xf32>
      %c0_7 = arith.constant 0 : index
      %c0_8 = arith.constant 0 : index
      %13 = vector.load %arg3[%c0_7, %c0_8] : memref<1x128xf32, #tpu.memory_space<vmem>>, vector<1x128xf32>
      %14 = vector.broadcast %13 : vector<1x128xf32> to vector<8x128xf32>
      %15 = arith.mulf %12, %14 : vector<8x128xf32>
      %c0_9 = arith.constant 0 : index
      %c0_10 = arith.constant 0 : index
      %16 = vector.load %arg5[%c0_9, %c0_10] : memref<8x1xf32, #tpu.memory_space<vmem>>, vector<8x1xf32>
      %cst = arith.constant dense<0.000000e+00> : vector<8xf32>
      %17 = vector.multi_reduction <add>, %15, %cst [1] : vector<8x128xf32> to vector<8xf32>
      %18 = vector.shape_cast %17 : vector<8xf32> to vector<8x1xf32>
      %19 = arith.addf %16, %18 : vector<8x1xf32>
      %c0_11 = arith.constant 0 : index
      %c0_12 = arith.constant 0 : index
      %20 = vector.load %arg5[%c0_11, %c0_12] : memref<8x1xf32, #tpu.memory_space<vmem>>, vector<8x1xf32>
      tpu.vector_store %arg5[%c0_11, %c0_12], %19 {strides = array<i32>} : memref<8x1xf32, #tpu.memory_space<vmem>>, vector<8x1xf32>,
    } else {
    }
    %c0_i32_4 = arith.constant 0 : i32
    %9 = arith.cmpi eq, %arg1, %c0_i32_4 : i32
    %10 = arith.extui %9 : i1 to i32
    %c0_i32_5 = arith.constant 0 : i32
    %11 = arith.cmpi ne, %10, %c0_i32_5 : i32
    scf.if %11 {
      %c0 = arith.constant 0 : index
      %c0_6 = arith.constant 0 : index
      %12 = vector.load %arg5[%c0, %c0_6] : memref<8x1xf32, #tpu.memory_space<vmem>>, vector<8x1xf32>
      %c0_7 = arith.constant 0 : index
      %c0_8 = arith.constant 0 : index
      %13 = memref.load %arg4[%c0_7, %c0_8] : memref<1x1xf32, #tpu.memory_space<smem>>
      %14 = vector.broadcast %13 : f32 to vector<8x1xf32>
      %15 = arith.addf %12, %14 : vector<8x1xf32>
      %c0_9 = arith.constant 0 : index
      %c0_10 = arith.constant 0 : index
      %16 = vector.load %arg5[%c0_9, %c0_10] : memref<8x1xf32, #tpu.memory_space<vmem>>, vector<8x1xf32>
      tpu.vector_store %arg5[%c0_9, %c0_10], %15 {strides = array<i32>} : memref<8x1xf32, #tpu.memory_space<vmem>>, vector<8x1xf32>,
    } else {
    }
    return
  }
  func.func @transform_0(%arg0: i32, %arg1: i32) -> (i32, i32) {
    %c0_i32 = arith.constant 0 : i32
    return %arg0, %arg1 : i32, i32
  }
  func.func @transform_1(%arg0: i32, %arg1: i32) -> (i32, i32) {
    %c0_i32 = arith.constant 0 : i32
    %c0_i32_0 = arith.constant 0 : i32
    return %c0_i32, %arg1 : i32, i32
  }
  func.func @transform_2(%arg0: i32, %arg1: i32) -> (i32, i32) {
    %c0_i32 = arith.constant 0 : i32
    %c0_i32_0 = arith.constant 0 : i32
    %c0_i32_1 = arith.constant 0 : i32
    return %c0_i32, %c0_i32_0 : i32, i32
  }
  func.func @transform_3(%arg0: i32, %arg1: i32) -> (i32, i32) {
    %c0_i32 = arith.constant 0 : i32
    %c0_i32_0 = arith.constant 0 : i32
    return %arg0, %c0_i32 : i32, i32
  }
}

</mosaic_0001>

<llo_original>
// kernel: tpu_custom_call.1
$region0: #{tpu_custom_call.1}
  #allocation0 [shape = 'u32[]', space=smem, size = 0x4, offset = 0x4, fixed_abs, tag = 'smem constant byte address 0x4 - core index']
  #allocation1 [shape = 'u32[144,128]{1,0:T(1,128)}', space=vmem, size = 0x12000, scoped, tag = 'internal scratch']
  #allocation2 [shape = 'f32[1,1]{1,0:T(1,128)S(6)}', space=smem, size = 0x200, scoped, tag = 'scoped memory for tpu_custom_call.1']
  %s0 = inlined_call_operand.vmem [shape: f32[2,32], index: 0, kind: input, shape index: {}]
  %s1 = inlined_call_operand.vmem [shape: f32[1,32], index: 1, kind: input, shape index: {}]
  %s2 = inlined_call_operand.<no memory space> [shape: f32[1,1], index: 2, kind: input, shape index: {}]
  %s3 = inlined_call_operand.vmem [shape: f32[8,1], index: 3, kind: output, shape index: {}]
  %s4 = sld [smem:[#allocation0]]
  $region34: #{tpu_custom_call.1} parent=0
    _
  %s6 = ssub.s32 1, %s4
  %s7 = scalar_select 0, %s6, %s4
  %8 = sst [smem:[#allocation2]] %s2
  // Predicated region
  $region2: #{tpu_custom_call.1} parent=0 // pred_check
    _
  $region3: #{tpu_custom_call.1} parent=0 // pred_check_branch
    %10 = sbr.rel (0) target = $region5
  $region4: #{tpu_custom_call.1} parent=0 // pred_region
    _
  $region5: #{tpu_custom_call.1} parent=0 // pred_fallthru
    _
  // Predicated region
  $region6: #{tpu_custom_call.1} parent=0 // pred_check
    _
  $region7: #{tpu_custom_call.1} parent=0 // pred_check_branch
    %12 = sbr.rel (0) target = $region9
  $region8: #{tpu_custom_call.1} parent=0 // pred_region
    _
  $region9: #{tpu_custom_call.1} parent=0 // pred_fallthru
    _
  // Predicated region
  $region10: #{tpu_custom_call.1} parent=0 // pred_check
    _
  $region11: #{tpu_custom_call.1} parent=0 // pred_check_branch
    %14 = sbr.rel (0) target = $region13
  $region12: #{tpu_custom_call.1} parent=0 // pred_region
    _
  $region13: #{tpu_custom_call.1} parent=0 // pred_fallthru
    _
  %p15 = scmp.eq.s32.totalorder 0, 0
  // Predicated region
  $region14: #{tpu_custom_call.1} parent=0 // pred_check
    %p16 = pneg %p15
  $region15: #{tpu_custom_call.1} parent=0 // pred_check_branch
    %18 = sbr.rel (%p16) target = $region17
  $region16: #{tpu_custom_call.1} parent=0 // pred_region
    %vm19 = vcmask 7168
    %20 = vst.msk [vmem:[%s3] sm:$0xff] %vm19, 0.0
    %v21 = vld [vmem:[%s0] sm:$0xff]
    %v22 = vld [vmem:[%s1] sm:$0x1]
    %v24 = vlaneseq
    %v25 = vshrl.u32 %v24, 7
    %v26 = vsub.s32 0, %v25
    %v27 = vrot.slane %v22, %v26
    %v29 = vmul.f32 %v21, %v27
    %v30 = vlaneseq
    %v31 = vand.u32 %v30, 127
    %s32 = smul.u32 0, 128
    %v33 = vstv %s32
    %v34 = vadd.s32 %v33, %v31
    %vm35 = vcmp.lt.s32.totalorder %v34, 32
    %v36 = vsel %vm35, 1, 0
    %vm37 = vcmp.eq.s32.totalorder %v36, 1
    %v38 = vsel %vm37, %v29, 0.0
    %v39 = vld [vmem:[%s3] sm:$0xff]
    %40 = vadd.xlane.f32.xlu0 %v38
    %v41 = vpop.xlane.xlu0 %40
    %v42 = vadd.f32 %v39, %v41
    %43 = vst.msk [vmem:[%s3] sm:$0xff] %vm19, %v42
  $region17: #{tpu_custom_call.1} parent=0 // pred_fallthru
    _
  %p44 = scmp.ne.s32.totalorder 0, 0
  // Predicated region
  $region18: #{tpu_custom_call.1} parent=0 // pred_check
    %p45 = pneg %p44
  $region19: #{tpu_custom_call.1} parent=0 // pred_check_branch
    %47 = sbr.rel (%p45) target = $region21
  $region20: #{tpu_custom_call.1} parent=0 // pred_region
    %v48 = vld [vmem:[%s0] sm:$0xff]
    %v49 = vld [vmem:[%s1] sm:$0x1]
    %v51 = vlaneseq
    %v52 = vshrl.u32 %v51, 7
    %v53 = vsub.s32 0, %v52
    %v54 = vrot.slane %v49, %v53
    %v56 = vmul.f32 %v48, %v54
    %v57 = vld [vmem:[%s3] sm:$0xff]
    %58 = vadd.xlane.f32.xlu0 %v56
    %v59 = vpop.xlane.xlu0 %58
    %v60 = vadd.f32 %v57, %v59
    %vm61 = vcmask 7168
    %62 = vst.msk [vmem:[%s3] sm:$0xff] %vm61, %v60
  $region21: #{tpu_custom_call.1} parent=0 // pred_fallthru
    _
  // Predicated region
  $region22: #{tpu_custom_call.1} parent=0 // pred_check
    %p63 = pneg %p15
  $region23: #{tpu_custom_call.1} parent=0 // pred_check_branch
    %65 = sbr.rel (%p63) target = $region25
  $region24: #{tpu_custom_call.1} parent=0 // pred_region
    %v66 = vld [vmem:[%s3] sm:$0xff]
    %s67 = sld [smem:[#allocation2]]
    %v68 = vstv %s67
    %v69 = vadd.f32 %v66, %v68
    %vm70 = vcmask 7168
    %71 = vst.msk [vmem:[%s3] sm:$0xff] %vm70, %v69
  $region25: #{tpu_custom_call.1} parent=0 // pred_fallthru
    _
  // Predicated region
  $region26: #{tpu_custom_call.1} parent=0 // pred_check
    _
  $region27: #{tpu_custom_call.1} parent=0 // pred_check_branch
    %73 = sbr.rel (0) target = $region29
  $region28: #{tpu_custom_call.1} parent=0 // pred_region
    _
  $region29: #{tpu_custom_call.1} parent=0 // pred_fallthru
    _
  // Predicated region
  $region30: #{tpu_custom_call.1} parent=0 // pred_check
    _
  $region31: #{tpu_custom_call.1} parent=0 // pred_check_branch
    %75 = sbr.rel (0) target = $region33
  $region32: #{tpu_custom_call.1} parent=0 // pred_region
    _
  $region33: #{tpu_custom_call.1} parent=0 // pred_fallthru
    _

</llo_original>
